<compile_context>
chip_gen: v5e
topology: v5e:2x2
jax: 0.10.0
libtpu: 0.0.40
codegen_flags: <defaults>
</compile_context>

<pallas_src>
import functools

import jax
import jax.numpy as jnp
from jax.experimental import pallas as pl
from jax.experimental.pallas import tpu as pltpu


def _round_up(x: int, m: int) -> int:
    return ((x + m - 1) // m) * m


def _cdiv(a: int, b: int) -> int:
    return (a + b - 1) // b


def _sublane_multiple(*dtypes) -> int:
    """Native sublane tile multiple for the narrowest dtype involved."""
    m = 8
    for dt in dtypes:
        m = max(m, 8 * (4 // jnp.dtype(dt).itemsize))   # f32:8, bf16:16, i8:32
    return m


def _vmem_limit_bytes() -> int:
    """Generation-aware VMEM limit: ~75% of physical capacity."""
    try:
        cap = getattr(pltpu.get_tpu_info(), "vmem_capacity_bytes", None)
        if cap:
            return int(cap) * 3 // 4           # ~96 MiB v5e/v6e, ~48 MiB v7x
    except Exception:
        pass
    return 48 << 20                            # safe floor (v7x has 64 MiB)


def _choose_tile(dim: int, pref: int, align: int, want_two_blocks: bool) -> int:
    """Tile size <= pref (aligned); optionally force >=2 grid blocks (megacore)."""
    t = min(pref, dim)
    t = _round_up(t, align)
    if want_two_blocks and _round_up(dim, t) // t < 2 and dim >= 2 * align:
        t = _round_up(_cdiv(dim, 2), align)
    return t


# ----------------------------------------------------------------------------
# Kernels
# ----------------------------------------------------------------------------

def _matmul_bias_resident_kernel(x_ref, w_ref, b_ref, o_ref):
    """One (tm, N) output strip: y = x @ W + b, W resident in VMEM."""
    acc = jnp.dot(x_ref[...].astype(w_ref.dtype), w_ref[...],
                  preferred_element_type=jnp.float32)
    o_ref[...] = (acc + b_ref[...]).astype(o_ref.dtype)


def _matmul_bias_stream_f32_kernel(x_ref, w_ref, b_ref, o_ref):
    """f32 output: accumulate directly into the K-resident output tile."""
    k = pl.program_id(2)

    @pl.when(k == 0)
    def _init():
        o_ref[...] = jnp.zeros_like(o_ref)

    o_ref[...] += jnp.dot(x_ref[...].astype(w_ref.dtype), w_ref[...],
                          preferred_element_type=jnp.float32)

    @pl.when(k == pl.num_programs(2) - 1)
    def _epilogue():
        o_ref[...] += b_ref[...]


def _matmul_bias_stream_acc_kernel(x_ref, w_ref, b_ref, o_ref, acc_ref):
    """Narrow output: f32 VMEM accumulator, downcast once in the epilogue."""
    k = pl.program_id(2)

    @pl.when(k == 0)
    def _init():
        acc_ref[...] = jnp.zeros_like(acc_ref)

    acc_ref[...] += jnp.dot(x_ref[...].astype(w_ref.dtype), w_ref[...],
                            preferred_element_type=jnp.float32)

    @pl.when(k == pl.num_programs(2) - 1)
    def _epilogue():
        o_ref[...] = (acc_ref[...] + b_ref[...]).astype(o_ref.dtype)


# ----------------------------------------------------------------------------
# Wrapper
# ----------------------------------------------------------------------------

@functools.partial(
    jax.jit,
    static_argnames=("tm", "tn", "tk", "compute_dtype", "force_stream"))
def single_gpu_forward(x, weight_t, bias, *, tm=512, tn=1024, tk=512,
                       compute_dtype=jnp.bfloat16, force_stream=False):
    """Pallas equivalent of SingleGPU(module).forward(x).

    x:        (B, S, H)    input (any float dtype; cast to the MXU dtype
                           in-kernel, hidden under the matmul)
    weight_t: (H, H_out)   inner-module weight, pre-transposed to (in, out).
                           Static parameter: pre-convert it to `compute_dtype`
                           once outside the hot path to avoid a per-call cast.
    bias:     (H_out,)     inner-module bias (added in f32)
    """
    # TODO(synk): `.cuda(non_blocking=True)` is a host->device transfer with no
    # Pallas equivalent; on TPU it maps to the implicit HBM->VMEM DMA that
    # pallas_call performs for each BlockSpec tile.

    B, S, H = x.shape
    K, N = weight_t.shape
    assert K == H and bias.shape == (N,)
    M = B * S
    out_dtype = x.dtype

    mxu_dtype = jnp.dtype(compute_dtype if compute_dtype is not None else x.dtype)

    x2d = x.reshape(M, K)                        # keep x dtype; cast in-kernel
    w2d = weight_t if weight_t.dtype == mxu_dtype else weight_t.astype(mxu_dtype)
    b2d = bias.reshape(1, N)
    if b2d.dtype != jnp.float32:
        b2d = b2d.astype(jnp.float32)

    x_item = jnp.dtype(x2d.dtype).itemsize
    w_item = jnp.dtype(mxu_dtype).itemsize
    o_item = jnp.dtype(out_dtype).itemsize

    sub_m = _sublane_multiple(x2d.dtype, out_dtype)   # 8 for f32, 16 for bf16
    M_al = _round_up(M, sub_m)
    K_al = _round_up(K, 128)                          # lane for x, sublane for W
    N_al = _round_up(N, 128)

    vmem_limit = _vmem_limit_bytes()
    budget = int(vmem_limit * 0.8)                    # headroom for compiler scratch

    # ---- path selection: weight-resident if the whole padded W fits --------
    tm_res = _choose_tile(M_al, tm, sub_m, want_two_blocks=True)
    M_res = _round_up(M_al, tm_res)
    resident_bytes = (
        2 * K_al * N_al * w_item            # W (pipeline allocates 2 buffers)
        + 2 * tm_res * K_al * x_item        # x tiles, double buffered
        + 2 * tm_res * N_al * o_item        # out tiles, double buffered
        + 2 * N_al * 4)                     # bias
    use_resident = (not force_stream) and resident_bytes <= budget

    def _pad2(a, r, c):
        return a if a.shape == (r, c) else jnp.pad(
            a, ((0, r - a.shape[0]), (0, c - a.shape[1])))

    if use_resident:
        # ------------------- weight-resident path ---------------------------
        M_pad, K_pad, N_pad = M_res, K_al, N_al
        tm_eff = tm_res

        xp = _pad2(x2d, M_pad, K_pad)
        wp = _pad2(w2d, K_pad, N_pad)
        bp = _pad2(b2d, 1, N_pad)

        grid = (M_pad // tm_eff,)
        cost = pl.CostEstimate(
            flops=2 * M_pad * N_pad * K_pad,
            transcendentals=0,
            bytes_accessed=(M_pad * K_pad * x_item + K_pad * N_pad * w_item
                            + N_pad * 4 + M_pad * N_pad * o_item))

        out_padded = pl.pallas_call(
            _matmul_bias_resident_kernel,
            out_shape=jax.ShapeDtypeStruct((M_pad, N_pad), out_dtype),
            grid_spec=pltpu.PrefetchScalarGridSpec(
                num_scalar_prefetch=0,
                grid=grid,
                in_specs=[
                    pl.BlockSpec((tm_eff, K_pad), lambda i: (i, 0)),
                    # Constant block index -> W is DMA'd once and stays
                    # resident in VMEM for all M tiles (no re-streaming).
                    pl.BlockSpec((K_pad, N_pad), lambda i: (0, 0)),
                    pl.BlockSpec((1, N_pad), lambda i: (0, 0)),
                ],
                out_specs=pl.BlockSpec((tm_eff, N_pad), lambda i: (i, 0)),
            ),
            compiler_params=pltpu.CompilerParams(
                dimension_semantics=("parallel",),
                vmem_limit_bytes=vmem_limit,
            ),
            cost_estimate=cost,
        )(xp, wp, bp)
        return out_padded[:M, :N].reshape(B, S, N)

    # ----------------------- streamed (M, N, K) path ------------------------
    tn_eff = _choose_tile(N_al, tn, 128, want_two_blocks=True)
    n_has_two = _round_up(N_al, tn_eff) // tn_eff >= 2
    tm_eff = _choose_tile(M_al, tm, sub_m, want_two_blocks=not n_has_two)
    tk_eff = _choose_tile(K_al, tk, 128, want_two_blocks=False)

    M_pad = _round_up(M_al, tm_eff)
    N_pad = _round_up(N_al, tn_eff)
    K_pad = _round_up(K_al, tk_eff)

    xp = _pad2(x2d, M_pad, K_pad)
    wp = _pad2(w2d, K_pad, N_pad)
    bp = _pad2(b2d, 1, N_pad)

    grid = (M_pad // tm_eff, N_pad // tn_eff, K_pad // tk_eff)

    direct_f32 = jnp.dtype(out_dtype) == jnp.dtype(jnp.float32)
    kernel = (_matmul_bias_stream_f32_kernel if direct_f32
              else _matmul_bias_stream_acc_kernel)
    scratch = () if direct_f32 else (pltpu.VMEM((tm_eff, tn_eff), jnp.float32),)

    cost = pl.CostEstimate(
        flops=2 * M_pad * N_pad * K_pad,
        transcendentals=0,
        bytes_accessed=((N_pad // tn_eff) * M_pad * K_pad * x_item
                        + (M_pad // tm_eff) * K_pad * N_pad * w_item
                        + N_pad * 4 + M_pad * N_pad * o_item))

    out_padded = pl.pallas_call(
        kernel,
        out_shape=jax.ShapeDtypeStruct((M_pad, N_pad), out_dtype),
        grid_spec=pltpu.PrefetchScalarGridSpec(
            num_scalar_prefetch=0,
            grid=grid,
            in_specs=[
                pl.BlockSpec((tm_eff, tk_eff), lambda i, j, k: (i, k)),
                pl.BlockSpec((tk_eff, tn_eff), lambda i, j, k: (k, j)),
                pl.BlockSpec((1, tn_eff), lambda i, j, k: (0, j)),
            ],
            out_specs=pl.BlockSpec((tm_eff, tn_eff), lambda i, j, k: (i, j)),
            scratch_shapes=scratch,
        ),
        compiler_params=pltpu.CompilerParams(
            dimension_semantics=("parallel", "parallel", "arbitrary"),
            vmem_limit_bytes=vmem_limit,
        ),
        cost_estimate=cost,
    )(xp, wp, bp)
    return out_padded[:M, :N].reshape(B, S, N)


if __name__ == "__main__":
    # Small shapes consistent with the module: batch=2, seq=8, hidden=32.
    B, S, H = 2, 8, 32
    H_OUT = 32

    key = jax.random.PRNGKey(0)
    kx, kw, kb = jax.random.split(key, 3)

    x = jax.random.normal(kx, (B, S, H), dtype=jnp.float32)
    # Deterministic inner-module parameters, stored pre-transposed (in, out).
    weight_t = (jax.random.normal(kw, (H, H_OUT), dtype=jnp.float32)
                * (1.0 / jnp.sqrt(H)))
    bias = jax.random.normal(kb, (H_OUT,), dtype=jnp.float32) * 0.01

    # Weights are static module parameters: convert to the MXU dtype ONCE
    # outside the per-call hot path (no extra HBM pass inside the kernel call).
    weight_bf16 = weight_t.astype(jnp.bfloat16)

    # Weight-resident path (what realistic Linear sizes hit on v5e/v6e).
    out = single_gpu_forward(x, weight_bf16, bias)
    jax.block_until_ready(out)

    # Also exercise the streamed (M, N, K) path on the same toy shapes.
    out_stream = single_gpu_forward(x, weight_bf16, bias, force_stream=True)
    jax.block_until_ready(out_stream)

    # References: exact f32 module math (loose tol vs bf16 MXU inputs) and a
    # same-precision bf16-input reference (tight tol).
    ref_f32 = x.reshape(-1, H) @ weight_t + bias
    ref_mxu = (x.reshape(-1, H).astype(jnp.bfloat16).astype(jnp.float32)
               @ weight_bf16.astype(jnp.float32)) + bias

    for o in (out, out_stream):
        o2 = o.reshape(-1, H_OUT)
        assert jnp.allclose(o2, ref_mxu, atol=1e-3, rtol=1e-3)
        assert jnp.allclose(o2, ref_f32, atol=5e-2, rtol=5e-2)

    print("KERNEL_OK")
</pallas_src>

<mosaic_0001>
module attributes {stable_mosaic.version = 11 : i64} {
  func.func @_matmul_bias_resident_kernel(%arg0: i32, %arg1: memref<8x128xf32, #tpu.memory_space<vmem>>, %arg2: memref<128x128xbf16, #tpu.memory_space<vmem>>, %arg3: memref<1x128xf32, #tpu.memory_space<vmem>>, %arg4: memref<8x128xf32, #tpu.memory_space<vmem>>) attributes {dimension_semantics = [#tpu.dimension_semantics<parallel>], iteration_bounds = array<i64: 2>, scalar_prefetch = 0 : i64, scratch_operands = 0 : i64, tpu.core_type = #tpu.core_type<tc>, window_params = [{transform_indices = @transform_0, window_bounds = array<i64: 8, 128>}, {pipeline_mode = #tpu.pipeline_mode<synchronous>, transform_indices = @transform_1, window_bounds = array<i64: 128, 128>}, {pipeline_mode = #tpu.pipeline_mode<synchronous>, transform_indices = @transform_2, window_bounds = array<i64: 1, 128>}, {transform_indices = @transform_3, window_bounds = array<i64: 8, 128>}]} {
    %c0 = arith.constant 0 : index
    %c0_0 = arith.constant 0 : index
    %0 = vector.load %arg1[%c0, %c0_0] : memref<8x128xf32, #tpu.memory_space<vmem>>, vector<8x128xf32>
    %1 = arith.truncf %0 : vector<8x128xf32> to vector<8x128xbf16>
    %c0_1 = arith.constant 0 : index
    %c0_2 = arith.constant 0 : index
    %2 = vector.load %arg2[%c0_1, %c0_2] : memref<128x128xbf16, #tpu.memory_space<vmem>>, vector<128x128xbf16>
    %cst = arith.constant dense<0.000000e+00> : vector<8x128xf32>
    %3 = tpu.matmul %1, %2, %cst {dimension_numbers = #tpu.dot_dimension_numbers<[1], [0], [0], [1], [0, 0, 1, 1], [], []>} : vector<8x128xbf16>, vector<128x128xbf16>, vector<8x128xf32> -> vector<8x128xf32>
    %c0_3 = arith.constant 0 : index
    %c0_4 = arith.constant 0 : index
    %4 = vector.load %arg3[%c0_3, %c0_4] : memref<1x128xf32, #tpu.memory_space<vmem>>, vector<1x128xf32>
    %5 = vector.broadcast %4 : vector<1x128xf32> to vector<8x128xf32>
    %6 = arith.addf %3, %5 : vector<8x128xf32>
    %c0_5 = arith.constant 0 : index
    %c0_6 = arith.constant 0 : index
    %7 = vector.load %arg4[%c0_5, %c0_6] : memref<8x128xf32, #tpu.memory_space<vmem>>, vector<8x128xf32>
    tpu.vector_store %arg4[%c0_5, %c0_6], %6 {strides = array<i32>} : memref<8x128xf32, #tpu.memory_space<vmem>>, vector<8x128xf32>,
    return
  }
  func.func @transform_0(%arg0: i32) -> (i32, i32) {
    %c0_i32 = arith.constant 0 : i32
    %c0_i32_0 = arith.constant 0 : i32
    return %arg0, %c0_i32 : i32, i32
  }
  func.func @transform_1(%arg0: i32) -> (i32, i32) {
    %c0_i32 = arith.constant 0 : i32
    %c0_i32_0 = arith.constant 0 : i32
    %c0_i32_1 = arith.constant 0 : i32
    return %c0_i32, %c0_i32_0 : i32, i32
  }
  func.func @transform_2(%arg0: i32) -> (i32, i32) {
    %c0_i32 = arith.constant 0 : i32
    %c0_i32_0 = arith.constant 0 : i32
    %c0_i32_1 = arith.constant 0 : i32
    return %c0_i32, %c0_i32_0 : i32, i32
  }
  func.func @transform_3(%arg0: i32) -> (i32, i32) {
    %c0_i32 = arith.constant 0 : i32
    %c0_i32_0 = arith.constant 0 : i32
    return %arg0, %c0_i32 : i32, i32
  }
}

</mosaic_0001>

<llo_original>
// kernel: single_gpu_forward.1
$region0: #{single_gpu_forward.1}
  #allocation0 [shape = 'u32[]', space=smem, size = 0x4, offset = 0x4, fixed_abs, tag = 'smem constant byte address 0x4 - core index']
  #allocation1 [shape = 'u32[72,128]{1,0:T(1,128)}', space=vmem, size = 0x9000, scoped, tag = 'internal scratch']
  %s0 = inlined_call_operand.vmem [shape: f32[16,128], index: 0, kind: input, shape index: {}]
  %s1 = inlined_call_operand.vmem [shape: bf16[128,128], index: 1, kind: input, shape index: {}]
  %s2 = inlined_call_operand.vmem [shape: f32[1,128], index: 2, kind: input, shape index: {}]
  %s3 = inlined_call_operand.vmem [shape: f32[16,128], index: 3, kind: output, shape index: {}]
  %s4 = sld [smem:[#allocation0]]
  $region45: #{single_gpu_forward.1} parent=0
    _
  %s6 = ssub.s32 1, %s4
  %s7 = scalar_select 0, %s6, %s4
  loop: start=0, step=1, limit=4
  $region2: #{single_gpu_forward.1} parent=0 // loop_pre_header
    _
  $region3: #{single_gpu_forward.1} parent=0 // loop_header
    %s9 = sphi 0, %s13
    %p10 = scmp.ge.s32.totalorder %s9, 4
    %s19 = sphi 0, %s21
    %s22 = sphi 0, %s19
    %s23 = sphi 0, %s22
    %s39 = sphi 0, %s23
    %s43 = sphi 0, %s43
    %s45 = sphi 0, %s43
    %s46 = sphi 0, %s45
    %s60 = sphi 0, %s46
    %s64 = sphi 0, %s64
    %s66 = sphi 0, %s64
    %s67 = sphi 0, %s66
    %s81 = sphi 0, %s67
    %s87 = sphi 0, %s89
    %s90 = sphi 0, %s87
    %s91 = sphi 0, %s90
    %s107 = sphi 0, %s91
  $region4: #{single_gpu_forward.1} parent=0 // loop_header_branch
    %12 = sbr.rel (%p10) target = $region8
  $region5: #{single_gpu_forward.1} parent=0 // loop_body
    %s14 = ssub.s32 %s9, 1
    %s15 = ssub.s32 %s9, 2
    %s16 = sadd.s32 %s9, 1
    %s17 = ssub.s32 %s9, %s16
    %p18 = scmp.eq.s32.totalorder %s17, 0
    %s20 = sadd.s32 %s19, 1
    %s21 = scalar_select %p18, %s19, %s20
    %p24 = pneg %p18
    %p25 = scmp.eq.s32.totalorder %s9, 1
    %p26 = por %p24, %p25
    %p27 = scmp.ne.s32.totalorder %s19, %s22
    %p28 = scmp.eq.s32.totalorder %s9, 0
    %p29 = por %p27, %p28
    %p30 = scmp.ne.s32.totalorder %s19, %s22
    %p31 = scmp.eq.s32.totalorder %s14, 1
    %p32 = por %p30, %p31
    %p33 = scmp.ne.s32.totalorder %s22, %s23
    %p34 = scmp.eq.s32.totalorder %s14, 0
    %p35 = por %p33, %p34
    %p36 = scmp.ne.s32.totalorder %s22, %s23
    %p37 = scmp.eq.s32.totalorder %s15, 1
    %p38 = por %p36, %p37
    %p40 = scmp.ne.s32.totalorder %s23, %s39
    %p41 = scmp.eq.s32.totalorder %s15, 0
    %p42 = por %p40, %p41
    %s44 = sadd.s32 %s43, 1
    %p47 = scmp.eq.s32.totalorder %s9, 1
    %p48 = scmp.ne.s32.totalorder %s43, %s45
    %p49 = scmp.eq.s32.totalorder %s9, 0
    %p50 = por %p48, %p49
    %p51 = scmp.ne.s32.totalorder %s43, %s45
    %p52 = scmp.eq.s32.totalorder %s14, 1
    %p53 = por %p51, %p52
    %p54 = scmp.ne.s32.totalorder %s45, %s46
    %p55 = scmp.eq.s32.totalorder %s14, 0
    %p56 = por %p54, %p55
    %p57 = scmp.ne.s32.totalorder %s45, %s46
    %p58 = scmp.eq.s32.totalorder %s15, 1
    %p59 = por %p57, %p58
    %p61 = scmp.ne.s32.totalorder %s46, %s60
    %p62 = scmp.eq.s32.totalorder %s15, 0
    %p63 = por %p61, %p62
    %s65 = sadd.s32 %s64, 1
    %p68 = scmp.eq.s32.totalorder %s9, 1
    %p69 = scmp.ne.s32.totalorder %s64, %s66
    %p70 = scmp.eq.s32.totalorder %s9, 0
    %p71 = por %p69, %p70
    %p72 = scmp.ne.s32.totalorder %s64, %s66
    %p73 = scmp.eq.s32.totalorder %s14, 1
    %p74 = por %p72, %p73
    %p75 = scmp.ne.s32.totalorder %s66, %s67
    %p76 = scmp.eq.s32.totalorder %s14, 0
    %p77 = por %p75, %p76
    %p78 = scmp.ne.s32.totalorder %s66, %s67
    %p79 = scmp.eq.s32.totalorder %s15, 1
    %p80 = por %p78, %p79
    %p82 = scmp.ne.s32.totalorder %s67, %s81
    %p83 = scmp.eq.s32.totalorder %s15, 0
    %p84 = por %p82, %p83
    %s85 = ssub.s32 %s9, %s16
    %p86 = scmp.eq.s32.totalorder %s85, 0
    %s88 = sadd.s32 %s87, 1
    %s89 = scalar_select %p86, %s87, %s88
    %p92 = pneg %p86
    %p93 = scmp.eq.s32.totalorder %s9, 1
    %p94 = por %p92, %p93
    %p95 = scmp.ne.s32.totalorder %s87, %s90
    %p96 = scmp.eq.s32.totalorder %s9, 0
    %p97 = por %p95, %p96
    %p98 = scmp.ne.s32.totalorder %s87, %s90
    %p99 = scmp.eq.s32.totalorder %s14, 1
    %p100 = por %p98, %p99
    %p101 = scmp.ne.s32.totalorder %s90, %s91
    %p102 = scmp.eq.s32.totalorder %s14, 0
    %p103 = por %p101, %p102
    %p104 = scmp.ne.s32.totalorder %s90, %s91
    %p105 = scmp.eq.s32.totalorder %s15, 1
    %p106 = por %p104, %p105
    %p108 = scmp.ne.s32.totalorder %s91, %s107
    %p109 = scmp.eq.s32.totalorder %s15, 0
    %p110 = por %p108, %p109
    %p111 = scmp.le.s32.totalorder 1, %s9
    %p112 = scmp.lt.s32.totalorder %s9, 3
    %p113 = pnand %p111, %p112
    %p114 = pneg %p113
    // Predicated region
    $region9: #{single_gpu_forward.1} parent=5 // pred_check
      _
    $region10: #{single_gpu_forward.1} parent=5 // pred_check_branch
      %116 = sbr.rel (%p113) target = $region12
    $region11: #{single_gpu_forward.1} parent=5 // pred_region
      %s117 = ssub.s32 %s9, 1
      // Predicated region
      $region13: #{single_gpu_forward.1} parent=11 // pred_check
        %p118 = pneg %p56
      $region14: #{single_gpu_forward.1} parent=11 // pred_check_branch
        %120 = sbr.rel (%p118) target = $region16
      $region15: #{single_gpu_forward.1} parent=11 // pred_region
        _
      $region16: #{single_gpu_forward.1} parent=11 // pred_fallthru
        _
      // Predicated region
      $region17: #{single_gpu_forward.1} parent=11 // pred_check
        %p121 = pneg %p77
      $region18: #{single_gpu_forward.1} parent=11 // pred_check_branch
        %123 = sbr.rel (%p121) target = $region20
      $region19: #{single_gpu_forward.1} parent=11 // pred_region
        _
      $region20: #{single_gpu_forward.1} parent=11 // pred_fallthru
        _
    $region12: #{single_gpu_forward.1} parent=5 // pred_fallthru
      _
    %p124 = scmp.lt.s32.totalorder %s9, 2
    // Predicated region
    $region21: #{single_gpu_forward.1} parent=5 // pred_check
      %p125 = pneg %p124
    $region22: #{single_gpu_forward.1} parent=5 // pred_check_branch
      %127 = sbr.rel (%p125) target = $region24
    $region23: #{single_gpu_forward.1} parent=5 // pred_region
      // Predicated region
      $region25: #{single_gpu_forward.1} parent=23 // pred_check
        %p128 = pneg %p29
      $region26: #{single_gpu_forward.1} parent=23 // pred_check_branch
        %130 = sbr.rel (%p128) target = $region28
      $region27: #{single_gpu_forward.1} parent=23 // pred_region
        %p131 = scmp.lt.s32.totalorder %s9, 1
        %s132 = scalar_select %p131, %s9, 1
        %s133 = smul.addr %s132, 8
        %s134 = scalar_lea.vmem %s0, %s133
      $region28: #{single_gpu_forward.1} parent=23 // pred_fallthru
        _
    $region24: #{single_gpu_forward.1} parent=5 // pred_fallthru
      _
    %p135 = scmp.le.s32.totalorder 1, %s9
    %p136 = scmp.lt.s32.totalorder %s9, 3
    %p137 = pnand %p135, %p136
    %p138 = pneg %p137
    // Predicated region
    $region29: #{single_gpu_forward.1} parent=5 // pred_check
      _
    $region30: #{single_gpu_forward.1} parent=5 // pred_check_branch
      %140 = sbr.rel (%p137) target = $region32
    $region31: #{single_gpu_forward.1} parent=5 // pred_region
      %s141 = ssub.s32 %s9, 1
      %p142 = scmp.lt.s32.totalorder %s14, 1
      %s143 = scalar_select %p142, %s14, 1
      %s144 = smul.addr %s143, 8
      %s145 = scalar_lea.vmem %s0, %s144
      %p146 = pneg %p35
      %p147 = pneg %p32
      %p148 = pneg %p56
      %p149 = pneg %p53
      %p150 = pneg %p77
      %p151 = pneg %p74
      %p152 = pneg %p103
      %p153 = pneg %p100
      %p154 = scmp.lt.s32.totalorder %s14, 1
      %s155 = scalar_select %p154, %s14, 1
      %s156 = smul.addr %s155, 8
      %s157 = scalar_lea.vmem %s3, %s156
      %p158 = scmp.lt.s32.totalorder %s14, 1
      %s159 = scalar_select %p158, %s14, 1
      %s160 = smul.addr %s159, 8
      %s161 = scalar_lea.vmem %s0, %s160
      %p162 = scmp.lt.s32.totalorder %s14, 1
      %s163 = scalar_select %p162, %s14, 1
      %s164 = smul.addr %s163, 8
      %s165 = scalar_lea.vmem %s3, %s164
      %v166 = vld [vmem:[%s161] sm:$0xff]
      %v167 = vpack.c.bf16 %v166, %v166
      %v168 = vld [vmem:[%s1] sm:$0xf]
      %v169 = vld [vmem:[%s1 + $0x4] sm:$0xf]
      %v170 = vld [vmem:[%s1 + $0x8] sm:$0xf]
      %v171 = vld [vmem:[%s1 + $0xc] sm:$0xf]
      %v172 = vld [vmem:[%s1 + $0x10] sm:$0xf]
      %v173 = vld [vmem:[%s1 + $0x14] sm:$0xf]
      %v174 = vld [vmem:[%s1 + $0x18] sm:$0xf]
      %v175 = vld [vmem:[%s1 + $0x1c] sm:$0xf]
      %v176 = vld [vmem:[%s1 + $0x20] sm:$0xf]
      %v177 = vld [vmem:[%s1 + $0x24] sm:$0xf]
      %v178 = vld [vmem:[%s1 + $0x28] sm:$0xf]
      %v179 = vld [vmem:[%s1 + $0x2c] sm:$0xf]
      %v180 = vld [vmem:[%s1 + $0x30] sm:$0xf]
      %v181 = vld [vmem:[%s1 + $0x34] sm:$0xf]
      %v182 = vld [vmem:[%s1 + $0x38] sm:$0xf]
      %v183 = vld [vmem:[%s1 + $0x3c] sm:$0xf]
      %v184 = vld [vmem:[%s2] sm:$0x1]
      %v186 = vperm.slane %v184, 0
      %v204 = vunpack.c.l.b16 %v168
      %v205 = vunpack.c.l.b16 %v169
      %v206 = vunpack.c.l.b16 %v170
      %v207 = vunpack.c.l.b16 %v171
      %v208 = vunpack.c.l.b16 %v172
      %v209 = vunpack.c.l.b16 %v173
      %v210 = vunpack.c.l.b16 %v174
      %v211 = vunpack.c.l.b16 %v175
      %v212 = vunpack.c.l.b16 %v176
      %v213 = vunpack.c.l.b16 %v177
      %v214 = vunpack.c.l.b16 %v178
      %v215 = vunpack.c.l.b16 %v179
      %v216 = vunpack.c.l.b16 %v180
      %v217 = vunpack.c.l.b16 %v181
      %v218 = vunpack.c.l.b16 %v182
      %v219 = vunpack.c.l.b16 %v183
      %v220 = vpack.c.b16 %v205, %v204
      %v221 = vpack.c.b16 %v207, %v206
      %v222 = vpack.c.b16 %v209, %v208
      %v223 = vpack.c.b16 %v211, %v210
      %v224 = vpack.c.b16 %v213, %v212
      %v225 = vpack.c.b16 %v215, %v214
      %v226 = vpack.c.b16 %v217, %v216
      %v227 = vpack.c.b16 %v219, %v218
      %236 = vmatpush.bf16.msra.mxu0 %v227
      %237 = vmatpush.bf16.msra.mxu0 %v226
      %238 = vmatpush.bf16.msra.mxu0 %v225
      %239 = vmatpush.bf16.msra.mxu0 %v224
      %240 = vmatpush.bf16.msra.mxu0 %v223
      %241 = vmatpush.bf16.msra.mxu0 %v222
      %242 = vmatpush.bf16.msra.mxu0 %v221
      %243 = vmatpush.bf16.msra.mxu0 %v220
      %244 = vmatmul.bf16.gmra.mxu0 %v167
      %v245 = vpop.f32.mrf.mxu0
      %v246 = vadd.f32 %v186, %v245
      %v247 = vpop.f32.mrf.mxu0
      %248 = vdwg.mxu0
      %249 = vst [vmem:[%s165] sm:$0xff] %v246
      %p250 = scmp.lt.s32.totalorder %s14, 1
      %s251 = scalar_select %p250, %s14, 1
      %s252 = smul.addr %s251, 8
      %s253 = scalar_lea.vmem %s3, %s252
      // Predicated region
      $region33: #{single_gpu_forward.1} parent=31 // pred_check
        %p254 = pneg %p100
      $region34: #{single_gpu_forward.1} parent=31 // pred_check_branch
        %256 = sbr.rel (%p254) target = $region36
      $region35: #{single_gpu_forward.1} parent=31 // pred_region
        _
      $region36: #{single_gpu_forward.1} parent=31 // pred_fallthru
        _
    $region32: #{single_gpu_forward.1} parent=5 // pred_fallthru
      _
    %p257 = scmp.le.s32.totalorder 2, %s9
    // Predicated region
    $region37: #{single_gpu_forward.1} parent=5 // pred_check
      %p258 = pneg %p257
    $region38: #{single_gpu_forward.1} parent=5 // pred_check_branch
      %260 = sbr.rel (%p258) target = $region40
    $region39: #{single_gpu_forward.1} parent=5 // pred_region
      %s261 = ssub.s32 %s9, 2
      // Predicated region
      $region41: #{single_gpu_forward.1} parent=39 // pred_check
        %p262 = pneg %p106
      $region42: #{single_gpu_forward.1} parent=39 // pred_check_branch
        %264 = sbr.rel (%p262) target = $region44
      $region43: #{single_gpu_forward.1} parent=39 // pred_region
        %p265 = scmp.lt.s32.totalorder %s15, 1
        %s266 = scalar_select %p265, %s15, 1
        %s267 = smul.addr %s266, 8
        %s268 = scalar_lea.vmem %s3, %s267
      $region44: #{single_gpu_forward.1} parent=39 // pred_fallthru
        _
    $region40: #{single_gpu_forward.1} parent=5 // pred_fallthru
      _
  $region6: #{single_gpu_forward.1} parent=0 // loop_footer
    %s13 = sadd.s32 1, %s9
  $region7: #{single_gpu_forward.1} parent=0 // loop_footer_branch
    %8 = sbr.rel target = $region3
  $region8: #{single_gpu_forward.1} parent=0 // loop_exit
    _

</llo_original>
